<compile_context>
chip_gen: v5e
topology: v5e:2x2
jax: 0.10.0
libtpu: 0.0.40
codegen_flags: <defaults>
</compile_context>

<pallas_src>
import functools

import jax
import jax.numpy as jnp
from jax import lax
from jax.experimental import pallas as pl
from jax.experimental.pallas import tpu as pltpu

LANES = 128
MAX_TILE_ROWS = 4096            # 4096 x 128 x 4B = 2 MiB per f32 input stream per buffer
MAX_CH_TILE = 32                # channel-tile cap (keeps the inner-loop working set small)
CH_TILE_TARGET_BYTES = 2 << 20  # per-input-stream byte budget for one channel tile
MIN_PALLAS_ELEMS = 32768        # below this a fused XLA elementwise+reduce beats the launch


# ----------------------------------------------------------------------------------------
# Kernels
# ----------------------------------------------------------------------------------------

def _flat_sq_sum_kernel(*refs, tile_rows, chunk_rows, has_mask, rows, needs_tail_mask):
    """One (tile_rows, 128) tile -> (1, 8, 128) partial sum of (pred - tgt)^2 [* mask].

    The tile is consumed with a fori_loop over (chunk_rows, 128) chunks accumulating into a
    single (8, 128) f32 block, so no full-tile temporary (which would exceed the 64-vreg
    file and spill to VMEM) is ever materialized.
    """
    if has_mask:
        pred_ref, tgt_ref, mask_ref, out_ref = refs
    else:
        pred_ref, tgt_ref, out_ref = refs

    n_chunks = tile_rows // chunk_rows
    tile_base = pl.program_id(0) * tile_rows
    if needs_tail_mask:
        # Hoisted out of the loop (JAX does not CSE broadcasted iotas).
        row_iota = lax.broadcasted_iota(jnp.int32, (chunk_rows, LANES), 0)

    def body(c, acc):
        r0 = pl.multiple_of(c * chunk_rows, chunk_rows)
        p = pred_ref[pl.ds(r0, chunk_rows), :].astype(jnp.float32)
        t = tgt_ref[pl.ds(r0, chunk_rows), :].astype(jnp.float32)
        d = p - t
        sq = d * d
        if has_mask:
            sq = sq * mask_ref[pl.ds(r0, chunk_rows), :].astype(jnp.float32)
        if needs_tail_mask:
            # Only emitted when no exact-divisor tile size exists: zero rows past the end.
            sq = jnp.where(tile_base + r0 + row_iota < rows, sq, 0.0)
        # (chunk_rows,128) -> (8,128): pure elementwise vreg adds (no cross-lane reduce,
        # no relayout -- the (8,128) vreg tile is preserved by this reshape).
        return acc + sq.reshape(chunk_rows // 8, 8, LANES).sum(axis=0)

    acc = lax.fori_loop(0, n_chunks, body, jnp.zeros((8, LANES), jnp.float32))
    out_ref[...] = acc.reshape(1, 8, LANES)


def _channel_sq_sum_kernel(pred_ref, tgt_ref, out_ref, *, hw):
    """One (tile_ch, HW) channel tile -> (tile_ch, 128) per-channel lane-partial SSE.

    Per-channel weights are applied *outside* the kernel on the tiny (C, 128) result, so the
    weighted path streams only pred+target (no broadcast full-resolution mask => ~33% less
    DMA traffic than the 3-stream path).
    """
    tile_ch = out_ref.shape[0]
    n_chunks = hw // LANES

    def body(j, acc):
        l0 = pl.multiple_of(j * LANES, LANES)
        p = pred_ref[:, pl.ds(l0, LANES)].astype(jnp.float32)
        t = tgt_ref[:, pl.ds(l0, LANES)].astype(jnp.float32)
        d = p - t
        return acc + d * d

    acc = lax.fori_loop(0, n_chunks, body,
                        jnp.zeros((tile_ch, LANES), jnp.float32), unroll=2)
    out_ref[...] = acc


# ----------------------------------------------------------------------------------------
# Tiling heuristics
# ----------------------------------------------------------------------------------------

def _pick_tile_rows(rows):
    """Row-tile: multiple of 8, <= MAX_TILE_ROWS; prefer an exact divisor of `rows` (so no
    tail-mask code is emitted) and keep >= 2 grid steps (both v7x TensorCores busy)."""
    if rows <= 16:
        return rows
    cap = min(MAX_TILE_ROWS, max(8, (rows // 2) // 8 * 8))
    best = 0
    for t in range(8, cap + 1, 8):
        if rows % t == 0:
            best = t
    if best >= max(256, cap // 8):
        return best
    return cap


def _pick_chunk_rows(tile_rows):
    for c in (64, 32, 16, 8):
        if tile_rows % c == 0:
            return c
    return 8  # unreachable on the kernel path (tile_rows is always a multiple of 8 there)


def _pick_tile_ch(num_ch, hw, itemsize):
    """Channel tile (multiple of 8 dividing C, or C itself) for the per-channel path, or
    None when no feasible tiling exists (caller falls back to the flat masked path)."""
    cap = min(MAX_CH_TILE, CH_TILE_TARGET_BYTES // max(1, hw * itemsize))
    if num_ch % 8 != 0:
        # No multiple-of-8 divisor exists; a single full-extent channel block is still legal
        # as long as it stays within the byte budget / vreg working set.
        ok = num_ch <= 2 * MAX_CH_TILE and num_ch * hw * itemsize <= CH_TILE_TARGET_BYTES
        return num_ch if ok else None
    if cap < 8:
        return None
    if num_ch >= 16:
        cap = min(cap, num_ch // 2)   # keep >= 2 grid steps when possible
    cap = max(8, cap // 8 * 8)
    best = 8
    for t in range(8, cap + 1, 8):
        if num_ch % t == 0:
            best = t
    return best


# ----------------------------------------------------------------------------------------
# Device paths
# ----------------------------------------------------------------------------------------

def _flatten_to_lanes(x, rows):
    """(...,) -> (rows, 128); zero-pads only when size % 128 != 0 (pad contributes 0)."""
    flat = x.reshape(-1)
    pad = rows * LANES - flat.shape[0]
    if pad:
        flat = jnp.pad(flat, (0, pad))
    return flat.reshape(rows, LANES)


def _flat_sq_sum(pred, tgt, mask_full, total):
    """Sum of (pred - tgt)^2 [* mask] over all elements via the flat streaming kernel."""
    rows = pl.cdiv(total, LANES)
    tile_rows = _pick_tile_rows(rows)
    num_tiles = pl.cdiv(rows, tile_rows)
    needs_tail_mask = (num_tiles * tile_rows != rows)
    chunk_rows = _pick_chunk_rows(tile_rows)

    inputs = [_flatten_to_lanes(pred, rows), _flatten_to_lanes(tgt, rows)]
    has_mask = mask_full is not None
    if has_mask:
        inputs.append(_flatten_to_lanes(mask_full, rows))

    kernel = functools.partial(
        _flat_sq_sum_kernel, tile_rows=tile_rows, chunk_rows=chunk_rows,
        has_mask=has_mask, rows=rows, needs_tail_mask=needs_tail_mask)

    in_spec = pl.BlockSpec((tile_rows, LANES), lambda i: (i, 0))
    tile_in_bytes = sum(tile_rows * LANES * x.dtype.itemsize for x in inputs)

    partials = pl.pallas_call(
        kernel,
        out_shape=jax.ShapeDtypeStruct((num_tiles, 8, LANES), jnp.float32),
        grid_spec=pltpu.PrefetchScalarGridSpec(
            num_scalar_prefetch=0,
            grid=(num_tiles,),
            in_specs=[in_spec] * len(inputs),
            out_specs=pl.BlockSpec((1, 8, LANES), lambda i: (i, 0, 0)),
        ),
        compiler_params=pltpu.CompilerParams(
            dimension_semantics=("parallel",),
            vmem_limit_bytes=int(2 * tile_in_bytes + (4 << 20))),
    )(*inputs)
    return partials.sum()


def _channel_weighted_sq_sum(pred2, tgt2, ch_weights, tile_ch):
    """sum_c w[c] * SSE(channel c); pred2/tgt2 are the (C, H*W) views (free reshape)."""
    num_ch, hw = pred2.shape

    kernel = functools.partial(_channel_sq_sum_kernel, hw=hw)
    in_spec = pl.BlockSpec((tile_ch, hw), lambda i: (i, 0))
    tile_in_bytes = tile_ch * hw * (pred2.dtype.itemsize + tgt2.dtype.itemsize)

    lane_partials = pl.pallas_call(
        kernel,
        out_shape=jax.ShapeDtypeStruct((num_ch, LANES), jnp.float32),
        grid_spec=pltpu.PrefetchScalarGridSpec(
            num_scalar_prefetch=0,
            grid=(num_ch // tile_ch,),
            in_specs=[in_spec, in_spec],
            out_specs=pl.BlockSpec((tile_ch, LANES), lambda i: (i, 0)),
        ),
        compiler_params=pltpu.CompilerParams(
            dimension_semantics=("parallel",),
            vmem_limit_bytes=int(2 * tile_in_bytes + (4 << 20))),
    )(pred2, tgt2)

    sse_per_channel = lane_partials.sum(axis=1)                       # (C,)  -- tiny
    return jnp.dot(sse_per_channel, ch_weights.astype(jnp.float32))


# ----------------------------------------------------------------------------------------
# Public entry point (forward pass of KeypointMSELoss)
# ----------------------------------------------------------------------------------------

def _get_weight_mask(target, target_weights, mask):
    """Combine pixel mask and target_weights exactly like the reference _get_mask.
    (The skip_empty_channel factor is handled separately as a scalar multiplier.)"""
    if mask is not None:
        assert mask.ndim == target.ndim and all(
            dm == dt or dm == 1 for dm, dt in zip(mask.shape, target.shape)), (
            f"mask and target have mismatched shapes {mask.shape} v.s. {target.shape}")
    if target_weights is not None:
        assert target_weights.ndim in (2, 4) and (
            target_weights.shape == target.shape[:target_weights.ndim]), (
            f"target_weights and target have mismatched shapes "
            f"{target_weights.shape} v.s. {target.shape}")
        ndim_pad = target.ndim - target_weights.ndim
        tw = target_weights.reshape(target_weights.shape + (1,) * ndim_pad)
        mask = tw if mask is None else mask * tw
    return mask


def keypoint_mse_loss(output, target, target_weights=None, mask=None,
                      use_target_weight=False, skip_empty_channel=False):
    """loss = mean((output - target)^2 [* _mask]) over ALL B*K*H*W elements.

    Like the reference forward, `use_target_weight` is never consulted -- target_weights are
    applied whenever they are provided (kept for signature parity only).
    """
    del use_target_weight
    assert output.shape == target.shape
    total = int(output.size)
    _mask = _get_weight_mask(target, target_weights, mask)

    if total <= MIN_PALLAS_ELEMS:
        # Tiny inputs: a fused XLA elementwise+reduce beats the pallas_call fixed cost.
        sq = jnp.square(output.astype(jnp.float32) - target.astype(jnp.float32))
        if _mask is not None:
            sq = sq * _mask.astype(jnp.float32)
        loss = jnp.mean(sq)
    elif _mask is None:
        loss = _flat_sq_sum(output, target, None, total) / jnp.float32(total)
    else:
        channel_wise = (target.ndim == 4 and _mask.ndim == 4
                        and all(s == 1 for s in _mask.shape[2:]))
        hw = target.shape[2] * target.shape[3] if target.ndim == 4 else 0
        tile_ch = None
        if channel_wise and hw % LANES == 0:
            num_ch = target.shape[0] * target.shape[1]
            tile_ch = _pick_tile_ch(num_ch, hw, output.dtype.itemsize)
        if tile_ch is not None:
            # Common case (target_weights=[B,K] or any channel-wise mask): stream only
            # pred+target; apply the per-channel weights on the tiny per-channel SSE output.
            b, k = target.shape[:2]
            w_ch = jnp.broadcast_to(_mask[..., 0, 0], (b, k)).reshape(b * k)
            s = _channel_weighted_sq_sum(output.reshape(b * k, hw),
                                         target.reshape(b * k, hw), w_ch, tile_ch)
        else:
            # True pixel-wise mask (or awkward channel count): stream the mask as a third
            # input. broadcast_to only materializes when the mask is not already full-size.
            s = _flat_sq_sum(output, target,
                             jnp.broadcast_to(_mask, target.shape), total)
        loss = s / jnp.float32(total)

    if skip_empty_channel:
        # The provided reference computes a single GLOBAL any() over the whole target
        # ((target != 0).flatten(2).any() with no dim), i.e. a scalar 0/1 factor; factoring
        # it out of the masked mean is exact.
        # TODO(synk): fuse this extra read pass over `target` into the streaming kernel as a
        # second per-tile "any" output if skip_empty_channel becomes a hot configuration.
        loss = loss * jnp.any(target != 0).astype(loss.dtype)
    return loss


# ----------------------------------------------------------------------------------------
# Self-test
# ----------------------------------------------------------------------------------------

def _ref_loss(output, target, target_weights=None, mask=None, skip_empty_channel=False):
    sq = jnp.square(output.astype(jnp.float32) - target.astype(jnp.float32))
    if target_weights is not None:
        w = target_weights.reshape(
            target_weights.shape + (1,) * (target.ndim - target_weights.ndim))
        sq = sq * w
    if mask is not None:
        sq = sq * mask
    if skip_empty_channel:
        sq = sq * jnp.any(target != 0)
    return jnp.mean(sq)


if __name__ == "__main__":
    key = jax.random.PRNGKey(0)
    ks = jax.random.split(key, 10)

    def check(name, got, want, rtol=1e-4, atol=1e-6):
        got = jax.block_until_ready(got)
        assert jnp.allclose(got, want, rtol=rtol, atol=atol), (name, got, want)

    # --- Kernel path 1: flat streaming, no mask (B=2, K=17, 64x64 heatmaps). ---
    B, K, H, W = 2, 17, 64, 64
    out1 = jax.random.uniform(ks[0], (B, K, H, W), jnp.float32, -0.2, 1.2)
    tgt1 = jax.random.uniform(ks[1], (B, K, H, W), jnp.float32, 0.0, 1.0)
    check("flat_unmasked", keypoint_mse_loss(out1, tgt1), _ref_loss(out1, tgt1))

    # --- Kernel path 2: keypoint-wise target_weights (C = 34, single channel tile). ---
    tw1 = jax.random.uniform(ks[2], (B, K), jnp.float32, 0.0, 1.0)
    check("channel_weighted_c34",
          keypoint_mse_loss(out1, tgt1, target_weights=tw1),
          _ref_loss(out1, tgt1, target_weights=tw1))

    # --- Kernel path 2, multi-tile channels (C = 32 -> 2 "parallel" grid steps). ---
    B2, K2 = 2, 16
    out2 = jax.random.uniform(ks[3], (B2, K2, H, W), jnp.float32, -0.2, 1.2)
    tgt2 = jax.random.uniform(ks[4], (B2, K2, H, W), jnp.float32, 0.0, 1.0)
    tw2 = jax.random.uniform(ks[5], (B2, K2), jnp.float32, 0.0, 1.0)
    check("channel_weighted_c32",
          keypoint_mse_loss(out2, tgt2, target_weights=tw2),
          _ref_loss(out2, tgt2, target_weights=tw2))

    # --- Kernel path 3: true pixel-wise mask (3-stream path) combined with weights. ---
    pix_mask = (jax.random.uniform(ks[6], (B2, 1, H, W)) > 0.3).astype(jnp.float32)
    check("pixel_mask",
          keypoint_mse_loss(out2, tgt2, target_weights=tw2, mask=pix_mask),
          _ref_loss(out2, tgt2, target_weights=tw2, mask=pix_mask))

    # --- Kernel path 1 with lane padding + in-kernel tail masking (odd total size). ---
    B3, K3, H3, W3 = 3, 17, 56, 56
    out3 = jax.random.uniform(ks[7], (B3, K3, H3, W3), jnp.float32, -0.2, 1.2)
    tgt3 = jax.random.uniform(ks[8], (B3, K3, H3, W3), jnp.float32, 0.0, 1.0)
    check("flat_tail", keypoint_mse_loss(out3, tgt3), _ref_loss(out3, tgt3))

    # --- skip_empty_channel: all-zero target -> loss must be exactly 0. ---
    check("skip_empty",
          keypoint_mse_loss(out1, jnp.zeros_like(tgt1), skip_empty_channel=True),
          jnp.float32(0.0))

    # --- Tiny-input plain-JAX fallback (the module's "small shape" example). ---
    out4 = jax.random.uniform(ks[9], (2, 4, 16, 16), jnp.float32, -0.2, 1.2)
    tgt4 = jax.random.uniform(ks[0], (2, 4, 16, 16), jnp.float32, 0.0, 1.0)
    check("tiny_fallback", keypoint_mse_loss(out4, tgt4), _ref_loss(out4, tgt4))

    print("KERNEL_OK")
</pallas_src>

<mosaic_0001>
module attributes {stable_mosaic.version = 11 : i64} {
  func.func @_flat_sq_sum_kernel(%arg0: i32, %arg1: memref<544x128xf32, #tpu.memory_space<vmem>>, %arg2: memref<544x128xf32, #tpu.memory_space<vmem>>, %arg3: memref<1x8x128xf32, #tpu.memory_space<vmem>>) attributes {dimension_semantics = [#tpu.dimension_semantics<parallel>], iteration_bounds = array<i64: 2>, scalar_prefetch = 0 : i64, scratch_operands = 0 : i64, tpu.core_type = #tpu.core_type<tc>, window_params = [{transform_indices = @transform_0, window_bounds = array<i64: 544, 128>}, {transform_indices = @transform_1, window_bounds = array<i64: 544, 128>}, {transform_indices = @transform_2, window_bounds = array<i64: 1, 8, 128>}]} {
    %cst = arith.constant 0.000000e+00 : f32
    %0 = vector.broadcast %cst : f32 to vector<8x128xf32>
    %c0_i32 = arith.constant 0 : i32
    %c17_i32 = arith.constant 17 : i32
    %1 = arith.addi %c0_i32, %c17_i32 : i32
    %c1_i32 = arith.constant 1 : i32
    %2 = scf.for %arg4 = %c0_i32 to %1 step %c1_i32 iter_args(%arg5 = %0) -> (vector<8x128xf32>)  : i32 {
      %c32_i32 = arith.constant 32 : i32
      %5 = arith.muli %arg4, %c32_i32 : i32
      %6 = tpu.assume_multiple %5, 32 : i32
      %7 = arith.index_cast %6 : i32 to index
      %c0_3 = arith.constant 0 : index
      %8 = vector.load %arg1[%7, %c0_3] : memref<544x128xf32, #tpu.memory_space<vmem>>, vector<32x128xf32>
      %9 = arith.index_cast %6 : i32 to index
      %c0_4 = arith.constant 0 : index
      %10 = vector.load %arg2[%9, %c0_4] : memref<544x128xf32, #tpu.memory_space<vmem>>, vector<32x128xf32>
      %11 = arith.subf %8, %10 : vector<32x128xf32>
      %12 = arith.mulf %11, %11 : vector<32x128xf32>
      %13 = vector.shape_cast %12 : vector<32x128xf32> to vector<4x8x128xf32>
      %cst_5 = arith.constant dense<0.000000e+00> : vector<8x128xf32>
      %14 = vector.multi_reduction <add>, %13, %cst_5 [0] : vector<4x8x128xf32> to vector<8x128xf32>
      %15 = arith.addf %arg5, %14 : vector<8x128xf32>
      scf.yield %15 : vector<8x128xf32>
    }
    %c17_i32_0 = arith.constant 17 : i32
    %3 = vector.shape_cast %2 : vector<8x128xf32> to vector<1x8x128xf32>
    %c0 = arith.constant 0 : index
    %c0_1 = arith.constant 0 : index
    %c0_2 = arith.constant 0 : index
    %4 = vector.load %arg3[%c0, %c0_1, %c0_2] : memref<1x8x128xf32, #tpu.memory_space<vmem>>, vector<1x8x128xf32>
    tpu.vector_store %arg3[%c0, %c0_1, %c0_2], %3 {strides = array<i32>} : memref<1x8x128xf32, #tpu.memory_space<vmem>>, vector<1x8x128xf32>,
    return
  }
  func.func @transform_0(%arg0: i32) -> (i32, i32) {
    %c0_i32 = arith.constant 0 : i32
    %c0_i32_0 = arith.constant 0 : i32
    return %arg0, %c0_i32 : i32, i32
  }
  func.func @transform_1(%arg0: i32) -> (i32, i32) {
    %c0_i32 = arith.constant 0 : i32
    %c0_i32_0 = arith.constant 0 : i32
    return %arg0, %c0_i32 : i32, i32
  }
  func.func @transform_2(%arg0: i32) -> (i32, i32, i32) {
    %c0_i32 = arith.constant 0 : i32
    %c0_i32_0 = arith.constant 0 : i32
    %c0_i32_1 = arith.constant 0 : i32
    return %arg0, %c0_i32, %c0_i32_0 : i32, i32, i32
  }
}

</mosaic_0001>

<llo_original>
// kernel: tpu_custom_call.1
$region0: #{tpu_custom_call.1}
  #allocation0 [shape = 'u32[]', space=smem, size = 0x4, offset = 0x4, fixed_abs, tag = 'smem constant byte address 0x4 - core index']
  #allocation1 [shape = 'u32[72,128]{1,0:T(1,128)}', space=vmem, size = 0x9000, scoped, tag = 'internal scratch']
  %s0 = inlined_call_operand.hbm [shape: f32[1088,128], index: 0, kind: input, shape index: {}]
  %s1 = inlined_call_operand.hbm [shape: f32[1088,128], index: 1, kind: input, shape index: {}]
  %s2 = inlined_call_operand.hbm [shape: f32[2,8,128], index: 2, kind: output, shape index: {}]
  %s3 = sld [smem:[#allocation0]]
  $region56: #{tpu_custom_call.1} parent=0
    _
  %s5 = ssub.s32 1, %s3
  %s6 = scalar_select 0, %s5, %s3
  $region1: #{tpu_custom_call.1} parent=0
    #allocation2 [shape = 'u8[557056]{0}', space=vmem, size = 0x88000, scoped, tag = 'input window, operand 0']
    #allocation3 [shape = 's32[2]{0}', space=sflag, size = 0x8, scoped, tag = 'scoped memory for tpu_custom_call.1']
    #allocation4 [shape = 's32[2]{0}', space=sflag, size = 0x8, scoped, tag = 'scoped memory for tpu_custom_call.1']
    #allocation5 [shape = 'u8[557056]{0}', space=vmem, size = 0x88000, scoped, tag = 'input window, operand 1']
    #allocation6 [shape = 's32[2]{0}', space=sflag, size = 0x8, scoped, tag = 'scoped memory for tpu_custom_call.1']
    #allocation7 [shape = 'u8[8192]{0}', space=vmem, size = 0x2000, scoped, tag = 'output window, operand 0']
    %7 = vsyncpa [#allocation3], 0
    %s8 = scalar_lea.sflag [#allocation3], 1
    %9 = vsyncpa %s8, 0
    %10 = vsyncpa [#allocation6], 0
    %s11 = scalar_lea.sflag [#allocation6], 1
    %12 = vsyncpa %s11, 0
    %13 = vsyncpa [#allocation4], 0
    %s14 = scalar_lea.sflag [#allocation4], 1
    %15 = vsyncpa %s14, 0
    loop: start=0, step=1, limit=4
    $region2: #{tpu_custom_call.1} parent=1 // loop_pre_header
      _
    $region3: #{tpu_custom_call.1} parent=1 // loop_header
      %s17 = sphi 0, %s21
      %p18 = scmp.ge.s32.totalorder %s17, 4
      %s27 = sphi 0, %s29
      %s30 = sphi 0, %s27
      %s31 = sphi 0, %s30
      %s47 = sphi 0, %s31
      %s53 = sphi 0, %s55
      %s56 = sphi 0, %s53
      %s57 = sphi 0, %s56
      %s73 = sphi 0, %s57
      %s79 = sphi 0, %s81
      %s82 = sphi 0, %s79
      %s83 = sphi 0, %s82
      %s99 = sphi 0, %s83
    $region4: #{tpu_custom_call.1} parent=1 // loop_header_branch
      %20 = sbr.rel (%p18) target = $region8
    $region5: #{tpu_custom_call.1} parent=1 // loop_body
      %s22 = ssub.s32 %s17, 1
      %s23 = ssub.s32 %s17, 2
      %s24 = sadd.s32 %s17, 1
      %s25 = ssub.s32 %s17, %s24
      %p26 = scmp.eq.s32.totalorder %s25, 0
      %s28 = sadd.s32 %s27, 1
      %s29 = scalar_select %p26, %s27, %s28
      %p32 = pneg %p26
      %p33 = scmp.eq.s32.totalorder %s17, 1
      %p34 = por %p32, %p33
      %p35 = scmp.ne.s32.totalorder %s27, %s30
      %p36 = scmp.eq.s32.totalorder %s17, 0
      %p37 = por %p35, %p36
      %p38 = scmp.ne.s32.totalorder %s27, %s30
      %p39 = scmp.eq.s32.totalorder %s22, 1
      %p40 = por %p38, %p39
      %p41 = scmp.ne.s32.totalorder %s30, %s31
      %p42 = scmp.eq.s32.totalorder %s22, 0
      %p43 = por %p41, %p42
      %p44 = scmp.ne.s32.totalorder %s30, %s31
      %p45 = scmp.eq.s32.totalorder %s23, 1
      %p46 = por %p44, %p45
      %p48 = scmp.ne.s32.totalorder %s31, %s47
      %p49 = scmp.eq.s32.totalorder %s23, 0
      %p50 = por %p48, %p49
      %s51 = ssub.s32 %s17, %s24
      %p52 = scmp.eq.s32.totalorder %s51, 0
      %s54 = sadd.s32 %s53, 1
      %s55 = scalar_select %p52, %s53, %s54
      %p58 = pneg %p52
      %p59 = scmp.eq.s32.totalorder %s17, 1
      %p60 = por %p58, %p59
      %p61 = scmp.ne.s32.totalorder %s53, %s56
      %p62 = scmp.eq.s32.totalorder %s17, 0
      %p63 = por %p61, %p62
      %p64 = scmp.ne.s32.totalorder %s53, %s56
      %p65 = scmp.eq.s32.totalorder %s22, 1
      %p66 = por %p64, %p65
      %p67 = scmp.ne.s32.totalorder %s56, %s57
      %p68 = scmp.eq.s32.totalorder %s22, 0
      %p69 = por %p67, %p68
      %p70 = scmp.ne.s32.totalorder %s56, %s57
      %p71 = scmp.eq.s32.totalorder %s23, 1
      %p72 = por %p70, %p71
      %p74 = scmp.ne.s32.totalorder %s57, %s73
      %p75 = scmp.eq.s32.totalorder %s23, 0
      %p76 = por %p74, %p75
      %s77 = ssub.s32 %s17, %s24
      %p78 = scmp.eq.s32.totalorder %s77, 0
      %s80 = sadd.s32 %s79, 1
      %s81 = scalar_select %p78, %s79, %s80
      %p84 = pneg %p78
      %p85 = scmp.eq.s32.totalorder %s17, 1
      %p86 = por %p84, %p85
      %p87 = scmp.ne.s32.totalorder %s79, %s82
      %p88 = scmp.eq.s32.totalorder %s17, 0
      %p89 = por %p87, %p88
      %p90 = scmp.ne.s32.totalorder %s79, %s82
      %p91 = scmp.eq.s32.totalorder %s22, 1
      %p92 = por %p90, %p91
      %p93 = scmp.ne.s32.totalorder %s82, %s83
      %p94 = scmp.eq.s32.totalorder %s22, 0
      %p95 = por %p93, %p94
      %p96 = scmp.ne.s32.totalorder %s82, %s83
      %p97 = scmp.eq.s32.totalorder %s23, 1
      %p98 = por %p96, %p97
      %p100 = scmp.ne.s32.totalorder %s83, %s99
      %p101 = scmp.eq.s32.totalorder %s23, 0
      %p102 = por %p100, %p101
      %p103 = scmp.le.s32.totalorder 1, %s17
      %p104 = scmp.lt.s32.totalorder %s17, 3
      %p105 = pnand %p103, %p104
      %p106 = pneg %p105
      // Predicated region
      $region9: #{tpu_custom_call.1} parent=5 // pred_check
        _
      $region10: #{tpu_custom_call.1} parent=5 // pred_check_branch
        %108 = sbr.rel (%p105) target = $region12
      $region11: #{tpu_custom_call.1} parent=5 // pred_region
        %s109 = ssub.s32 %s17, 1
      $region12: #{tpu_custom_call.1} parent=5 // pred_fallthru
        _
      %p110 = scmp.lt.s32.totalorder %s17, 2
      // Predicated region
      $region13: #{tpu_custom_call.1} parent=5 // pred_check
        %p111 = pneg %p110
      $region14: #{tpu_custom_call.1} parent=5 // pred_check_branch
        %113 = sbr.rel (%p111) target = $region16
      $region15: #{tpu_custom_call.1} parent=5 // pred_region
        // Predicated region
        $region17: #{tpu_custom_call.1} parent=15 // pred_check
          %p114 = pneg %p37
        $region18: #{tpu_custom_call.1} parent=15 // pred_check_branch
          %116 = sbr.rel (%p114) target = $region20
        $region19: #{tpu_custom_call.1} parent=15 // pred_region
          %s117 = sand.u32 %s27, 1
          %s118 = scalar_lea.sflag [#allocation3], %s117
          %s119 = sand.u32 %s27, 1
          %s120 = smul.addr %s119, 544
          %s121 = scalar_lea.vmem [#allocation2], %s120
          %s122 = smul.u32 68, %s17
          %124 = vsyncadd %s118, 0
          %s125 = smul.addr %s122, 8
          %s126 = scalar_lea.hbm %s0, %s125
          %s127 = sshll.u32 %s126, 4
          %s128 = int_to_ptr.hbm [resolvable:$true] %s127
          %s129 = sshll.u32 %s121, 4
          %s130 = int_to_ptr.vmem [resolvable:$true] %s129
          %135 = dma.hbm_to_vmem [thread:$0]  %s128, 8704, %s130, %s118, 128, 128, 8
        $region20: #{tpu_custom_call.1} parent=15 // pred_fallthru
          _
        // Predicated region
        $region21: #{tpu_custom_call.1} parent=15 // pred_check
          %p136 = pneg %p63
        $region22: #{tpu_custom_call.1} parent=15 // pred_check_branch
          %138 = sbr.rel (%p136) target = $region24
        $region23: #{tpu_custom_call.1} parent=15 // pred_region
          %s139 = sand.u32 %s53, 1
          %s140 = scalar_lea.sflag [#allocation6], %s139
          %s141 = sand.u32 %s53, 1
          %s142 = smul.addr %s141, 544
          %s143 = scalar_lea.vmem [#allocation5], %s142
          %s144 = smul.u32 68, %s17
          %146 = vsyncadd %s140, 0
          %s147 = smul.addr %s144, 8
          %s148 = scalar_lea.hbm %s1, %s147
          %s149 = sshll.u32 %s148, 4
          %s150 = int_to_ptr.hbm [resolvable:$true] %s149
          %s151 = sshll.u32 %s143, 4
          %s152 = int_to_ptr.vmem [resolvable:$true] %s151
          %157 = dma.hbm_to_vmem [thread:$0]  %s150, 8704, %s152, %s140, 128, 128, 8
        $region24: #{tpu_custom_call.1} parent=15 // pred_fallthru
          _
      $region16: #{tpu_custom_call.1} parent=5 // pred_fallthru
        _
      %p158 = scmp.le.s32.totalorder 1, %s17
      %p159 = scmp.lt.s32.totalorder %s17, 3
      %p160 = pnand %p158, %p159
      %p161 = pneg %p160
      // Predicated region
      $region25: #{tpu_custom_call.1} parent=5 // pred_check
        _
      $region26: #{tpu_custom_call.1} parent=5 // pred_check_branch
        %163 = sbr.rel (%p160) target = $region28
      $region27: #{tpu_custom_call.1} parent=5 // pred_region
        %s164 = ssub.s32 %s17, 1
        %s165 = sand.u32 %s30, 1
        %s166 = scalar_lea.sflag [#allocation3], %s165
        %s167 = sand.u32 %s30, 1
        %s168 = smul.addr %s167, 544
        %s169 = scalar_lea.vmem [#allocation2], %s168
        // Predicated region
        $region29: #{tpu_custom_call.1} parent=27 // pred_check
          %p170 = pneg %p43
        $region30: #{tpu_custom_call.1} parent=27 // pred_check_branch
          %172 = sbr.rel (%p170) target = $region32
        $region31: #{tpu_custom_call.1} parent=27 // pred_region
          %174 = dma.done %s166, 8704
        $region32: #{tpu_custom_call.1} parent=27 // pred_fallthru
          _
        %s175 = sand.u32 %s56, 1
        %s176 = scalar_lea.sflag [#allocation6], %s175
        %s177 = sand.u32 %s56, 1
        %s178 = smul.addr %s177, 544
        %s179 = scalar_lea.vmem [#allocation5], %s178
        // Predicated region
        $region33: #{tpu_custom_call.1} parent=27 // pred_check
          %p180 = pneg %p69
        $region34: #{tpu_custom_call.1} parent=27 // pred_check_branch
          %182 = sbr.rel (%p180) target = $region36
        $region35: #{tpu_custom_call.1} parent=27 // pred_region
          %184 = dma.done %s176, 8704
        $region36: #{tpu_custom_call.1} parent=27 // pred_fallthru
          _
        %s185 = sand.u32 %s30, 1
        %s186 = scalar_lea.sflag [#allocation3], %s185
        %s187 = sand.u32 %s30, 1
        %s188 = smul.addr %s187, 544
        %s189 = scalar_lea.vmem [#allocation2], %s188
        %p190 = pneg %p43
        %p191 = pneg %p40
        %s192 = sand.u32 %s56, 1
        %s193 = scalar_lea.sflag [#allocation6], %s192
        %s194 = sand.u32 %s56, 1
        %s195 = smul.addr %s194, 544
        %s196 = scalar_lea.vmem [#allocation5], %s195
        %p197 = pneg %p69
        %p198 = pneg %p66
        %p199 = pneg %p95
        %p200 = pneg %p92
        %s201 = sand.u32 %s82, 1
        %s202 = scalar_lea.sflag [#allocation4], %s201
        %s203 = sand.u32 %s82, 1
        %s204 = smul.addr %s203, 8
        %s205 = scalar_lea.vmem [#allocation7], %s204
        %s206 = smul.u32 68, %s22
        %s207 = smul.u32 68, %s22
        loop: start=0, step=1, limit=17
        $region37: #{tpu_custom_call.1} parent=27 // loop_pre_header
          _
        $region38: #{tpu_custom_call.1} parent=27 // loop_header
          %s209 = sphi 0, %s213
          %p210 = scmp.ge.s32.totalorder %s209, 17
          %v214 = vphi 0.0, %v237
        $region39: #{tpu_custom_call.1} parent=27 // loop_header_branch
          %212 = sbr.rel (%p210) target = $region43
        $region40: #{tpu_custom_call.1} parent=27 // loop_body
          %s215 = smul.u32 %s209, 32
          %s216 = scalar_lea.vmem %s169, %s215 [#allocation2]
          %v217 = vld [vmem:[%s216] sm:$0xff]
          %v218 = vld [vmem:[%s216 + $0x8] sm:$0xff]
          %v219 = vld [vmem:[%s216 + $0x10] sm:$0xff]
          %v220 = vld [vmem:[%s216 + $0x18] sm:$0xff]
          %s221 = scalar_lea.vmem %s179, %s215 [#allocation5]
          %v222 = vld [vmem:[%s221] sm:$0xff]
          %v223 = vld [vmem:[%s221 + $0x8] sm:$0xff]
          %v224 = vld [vmem:[%s221 + $0x10] sm:$0xff]
          %v225 = vld [vmem:[%s221 + $0x18] sm:$0xff]
          %v226 = vsub.f32 %v217, %v222
          %v227 = vsub.f32 %v218, %v223
          %v228 = vsub.f32 %v219, %v224
          %v229 = vsub.f32 %v220, %v225
          %v230 = vmul.f32 %v226, %v226
          %v231 = vmul.f32 %v227, %v227
          %v232 = vmul.f32 %v228, %v228
          %v233 = vmul.f32 %v229, %v229
          %v234 = vadd.f32 %v230, %v231
          %v235 = vadd.f32 %v234, %v232
          %v236 = vadd.f32 %v235, %v233
          %v237 = vadd.f32 %v214, %v236
        $region41: #{tpu_custom_call.1} parent=27 // loop_footer
          %s213 = sadd.s32 1, %s209
        $region42: #{tpu_custom_call.1} parent=27 // loop_footer_branch
          %208 = sbr.rel target = $region38
        $region43: #{tpu_custom_call.1} parent=27 // loop_exit
          _
        %238 = vst [vmem:[%s205] sm:$0xff] %v214
        %s239 = sand.u32 %s82, 1
        %s240 = scalar_lea.sflag [#allocation4], %s239
        %s241 = sand.u32 %s82, 1
        %s242 = smul.addr %s241, 8
        %s243 = scalar_lea.vmem [#allocation7], %s242
        // Predicated region
        $region44: #{tpu_custom_call.1} parent=27 // pred_check
          %p244 = pneg %p92
        $region45: #{tpu_custom_call.1} parent=27 // pred_check_branch
          %246 = sbr.rel (%p244) target = $region47
        $region46: #{tpu_custom_call.1} parent=27 // pred_region
          %248 = vsyncadd %s240, 0
          %s249 = smul.addr %s22, 8
          %s250 = scalar_lea.hbm %s2, %s249
          %s252 = sshll.u32 %s243, 4
          %s253 = int_to_ptr.vmem [resolvable:$true] %s252
          %s254 = sshll.u32 %s250, 4
          %s255 = int_to_ptr.hbm [resolvable:$true] %s254
          %257 = dma.vmem_to_hbm [thread:$0]  %s253, 128, %s255, %s240
        $region47: #{tpu_custom_call.1} parent=27 // pred_fallthru
          _
      $region28: #{tpu_custom_call.1} parent=5 // pred_fallthru
        _
      %p258 = scmp.le.s32.totalorder 2, %s17
      // Predicated region
      $region48: #{tpu_custom_call.1} parent=5 // pred_check
        %p259 = pneg %p258
      $region49: #{tpu_custom_call.1} parent=5 // pred_check_branch
        %261 = sbr.rel (%p259) target = $region51
      $region50: #{tpu_custom_call.1} parent=5 // pred_region
        %s262 = ssub.s32 %s17, 2
        // Predicated region
        $region52: #{tpu_custom_call.1} parent=50 // pred_check
          %p263 = pneg %p98
        $region53: #{tpu_custom_call.1} parent=50 // pred_check_branch
          %265 = sbr.rel (%p263) target = $region55
        $region54: #{tpu_custom_call.1} parent=50 // pred_region
          %s266 = sand.u32 %s83, 1
          %s267 = scalar_lea.sflag [#allocation4], %s266
          %s268 = sand.u32 %s83, 1
          %s269 = smul.addr %s268, 8
          %s270 = scalar_lea.vmem [#allocation7], %s269
          %272 = dma.done %s267, 128
        $region55: #{tpu_custom_call.1} parent=50 // pred_fallthru
          _
      $region51: #{tpu_custom_call.1} parent=5 // pred_fallthru
        _
    $region6: #{tpu_custom_call.1} parent=1 // loop_footer
      %s21 = sadd.s32 1, %s17
    $region7: #{tpu_custom_call.1} parent=1 // loop_footer_branch
      %16 = sbr.rel target = $region3
    $region8: #{tpu_custom_call.1} parent=1 // loop_exit
      _
    %273 = vsyncpa [#allocation3], 1
    %s274 = scalar_lea.sflag [#allocation3], 1
    %275 = vsyncpa %s274, 1
    %276 = vsyncpa [#allocation6], 1
    %s277 = scalar_lea.sflag [#allocation6], 1
    %278 = vsyncpa %s277, 1
    %279 = vsyncpa [#allocation4], 1
    %s280 = scalar_lea.sflag [#allocation4], 1
    %281 = vsyncpa %s280, 1

</llo_original>
